<compile_context>
chip_gen: v7x
topology: tpu7x:2x2x1
jax: 0.10.0
libtpu: 0.0.40
codegen_flags: <defaults>
</compile_context>

<pallas_src>
import functools

import numpy as np
import jax
import jax.numpy as jnp
from jax.experimental import pallas as pl
from jax.experimental.pallas import tpu as pltpu


def _round_up(x, m):
    return (x + m - 1) // m * m


# ----------------------------------------------------------------------------
# Parameter setup (mirrors Polar2Cart.__init__, mode='in') — host-side numpy.
# ----------------------------------------------------------------------------
def build_polar2cart_params(polar_size, cart_size, center_drop_grid_size=3.0):
    """Returns
      M    : (Hc*Wc, Hp*Wp) f32  combined bilinear-sample + scatter matrix
      keep : (Hc*Wc,)       f32  1.0 where ref_feat is kept, 0.0 where overwritten
      grid : (N, 2)  normalized grid_sample coords (x, y)   (for reference check)
      xy   : (N, 2)  integer cartesian (y, x) scatter targets (for reference check)
    """
    Hc, Wc = cart_size
    Hp, Wp = polar_size
    yy_org, xx_org = np.meshgrid(np.arange(Hc), np.arange(Wc), indexing="ij")
    yy = yy_org - Hc / 2.0 + 0.5
    xx = xx_org - Wc / 2.0 + 0.5
    depth = np.sqrt(xx ** 2 + yy ** 2)
    phi = np.pi - np.arctan2(yy, xx)
    index_y = depth / (Hc / 2.0 * np.sqrt(2.0)) * (Hp + center_drop_grid_size) \
        - center_drop_grid_size
    index_x = phi / np.pi / 2.0 * Wp
    mask = (index_y > 0).reshape(-1)
    gy = index_y / Hp * 2.0 - 1.0
    gx = index_x / Wp * 2.0 - 1.0
    grid = np.stack([gx, -gy], axis=-1).reshape(-1, 2)[mask]        # (N, 2) (x, y)
    xy = np.stack([yy_org, xx_org], axis=-1).reshape(-1, 2)[mask]   # (N, 2) (y, x)

    # Bilinear weights of grid_sample (align_corners=True, padding_mode='zeros').
    px = (grid[:, 0] + 1.0) / 2.0 * (Wp - 1)
    py = (grid[:, 1] + 1.0) / 2.0 * (Hp - 1)
    x0 = np.floor(px).astype(np.int64); x1 = x0 + 1
    y0 = np.floor(py).astype(np.int64); y1 = y0 + 1
    wx1 = px - x0; wx0 = 1.0 - wx1
    wy1 = py - y0; wy0 = 1.0 - wy1

    N = grid.shape[0]
    w_sample = np.zeros((N, Hp * Wp), dtype=np.float64)

    def add(yc, xc, w):
        valid = (yc >= 0) & (yc < Hp) & (xc >= 0) & (xc < Wp)
        idx = np.where(valid, yc * Wp + xc, 0)
        np.add.at(w_sample, (np.arange(N), idx), np.where(valid, w, 0.0))

    add(y0, x0, wy0 * wx0)
    add(y0, x1, wy0 * wx1)
    add(y1, x0, wy1 * wx0)
    add(y1, x1, wy1 * wx1)

    rows = xy[:, 0] * Wc + xy[:, 1]            # each cart pixel appears at most once
    # Torch's advanced-index scatter is last-write-wins; our fold assumes unique rows.
    assert len(np.unique(rows)) == len(rows), "scatter targets must be unique"
    M = np.zeros((Hc * Wc, Hp * Wp), dtype=np.float64)
    M[rows, :] = w_sample
    keep = np.ones((Hc * Wc,), dtype=np.float64)
    keep[rows] = 0.0
    return (M.astype(np.float32), keep.astype(np.float32),
            grid.astype(np.float32), xy.astype(np.int64))


# ----------------------------------------------------------------------------
# Tile selection — VMEM-budget aware, works on v5e/v6e/v7x.
# ----------------------------------------------------------------------------
def _vmem_working_set(bcp, tk, tn):
    return (2 * tk * tn * 2        # M^T block  (bf16, double-buffered)
            + 2 * bcp * tk * 2     # x block    (bf16, double-buffered)
            + 2 * bcp * tn * 4     # ref*keep block (f32, double-buffered)
            + 2 * bcp * tn * 4     # out block  (f32, double-buffered)
            + bcp * tn * 4)        # f32 accumulator scratch


def choose_tiles(hw_cart, hw_polar, bc, vmem_budget=40 << 20):
    bcp = _round_up(max(bc, 1), 16)             # folded batch*channels (sublanes)
    tk = min(512, _round_up(hw_polar, 128))     # reduction tile (polar pixels)
    tn = min(2048, _round_up(hw_cart, 128))     # output lane tile (cart pixels)
    while tn > 128 and _vmem_working_set(bcp, tk, tn) > vmem_budget:
        tn = max(128, tn // 2)
    return tn, tk, bcp


def vmem_limit_bytes(bcp, tk, tn):
    est = _vmem_working_set(bcp, tk, tn)
    # Stay well under v7x's 64 MiB physical VMEM per core; at least the 32 MiB
    # scoped default (v5e's default is 16 MiB, so be explicit).
    return int(min(48 << 20, max(32 << 20, 2 * est)))


# ----------------------------------------------------------------------------
# Block plan: compact M^T blocks + data-dependent x fetch table + counts.
# ----------------------------------------------------------------------------
def build_block_plan(M, tk, tn):
    """M: (Hc*Wc, Hp*Wp).  Builds the transposed, block-compacted operand.

    Returns
      blocks : (num_m * max_nnz, tk, tn) f32 — only nonzero (k-block, m-block)
               tiles of M^T, laid out contiguously per output column block.
      table  : (num_m, max_nnz) i32 — k-block index feeding output block i at
               reduction step j (clamped to the last valid entry so the x DMA
               is skipped on padded steps).
      counts : (num_m,) i32 — number of real nonzero k-blocks per output block.
    """
    hw_c, hw_p = M.shape
    Mp = _round_up(hw_c, tn)
    Kp = _round_up(hw_p, tk)
    MT = np.zeros((Kp, Mp), dtype=np.float32)
    MT[:hw_p, :hw_c] = M.T
    num_m, num_k = Mp // tn, Kp // tk

    nz_lists = []
    for i in range(num_m):
        col = MT[:, i * tn:(i + 1) * tn]
        nz = [k for k in range(num_k)
              if np.any(col[k * tk:(k + 1) * tk] != 0.0)]
        nz_lists.append(nz)
    counts = np.array([len(nz) for nz in nz_lists], dtype=np.int32)
    max_nnz = max(1, int(counts.max()))

    table = np.zeros((num_m, max_nnz), dtype=np.int32)
    blocks = np.zeros((num_m * max_nnz, tk, tn), dtype=np.float32)
    for i, nz in enumerate(nz_lists):
        for j in range(max_nnz):
            if nz:
                k = nz[min(j, len(nz) - 1)]
                table[i, j] = k
                if j < len(nz):
                    blocks[i * max_nnz + j] = MT[k * tk:(k + 1) * tk,
                                                 i * tn:(i + 1) * tn]
    return blocks, table, counts


# ----------------------------------------------------------------------------
# Pallas kernel: block-sparse tiled bf16 matmul (f32 accumulate) + ref blend.
# ----------------------------------------------------------------------------
def _polar2cart_kernel(tbl_ref, cnt_ref, m_ref, x_ref, refk_ref, out_ref, acc_ref):
    i = pl.program_id(0)          # output column block (cart pixels / lanes)
    j = pl.program_id(1)          # position in this block's nonzero-k list

    @pl.when(j == 0)
    def _init():
        acc_ref[...] = jnp.zeros_like(acc_ref)

    @pl.when(j < cnt_ref[i])      # skip padded (all-zero) reduction steps
    def _accumulate():
        acc_ref[...] += jnp.dot(x_ref[...], m_ref[0],
                                preferred_element_type=jnp.float32)

    @pl.when(j == pl.num_programs(1) - 1)
    def _finalize():
        # keep-mask already folded into refk in the wrapper.
        out_ref[...] = (refk_ref[...] + acc_ref[...]).astype(out_ref.dtype)


@functools.partial(jax.jit, static_argnames=("tk", "tn", "bcp"))
def polar2cart_forward(polar_feat, ref_feat, M_blocks_bf16, keep, table, counts,
                       *, tk, tn, bcp):
    """polar_feat: (B, C, Hp, Wp); ref_feat: (B, C, Hc, Wc)  ->  (B, C, Hc, Wc)."""
    B, C, Hp, Wp = polar_feat.shape
    _, _, Hc, Wc = ref_feat.shape
    BC = B * C
    num_m, max_nnz = table.shape
    Kp = _round_up(Hp * Wp, tk)
    Mp = num_m * tn

    # Transposed layout: no big relayout at all — batch*channels on sublanes,
    # cart pixels on the 128-lane axis (lane-dense output), keep folded in.
    x = polar_feat.reshape(BC, Hp * Wp).astype(jnp.bfloat16)        # (BC, Hp*Wp)
    r = ref_feat.reshape(BC, Hc * Wc) * keep[None, :]               # (BC, Hc*Wc)
    x = jnp.pad(x, ((0, bcp - BC), (0, Kp - Hp * Wp)))
    r = jnp.pad(r, ((0, bcp - BC), (0, Mp - Hc * Wc)))

    out = pl.pallas_call(
        _polar2cart_kernel,
        out_shape=jax.ShapeDtypeStruct((bcp, Mp), ref_feat.dtype),
        grid_spec=pltpu.PrefetchScalarGridSpec(
            num_scalar_prefetch=2,
            grid=(num_m, max_nnz),
            in_specs=[
                # Compact M^T block: contiguous per (output block, nonzero-k slot).
                pl.BlockSpec((1, tk, tn),
                             lambda i, j, tbl, cnt: (i * max_nnz + j, 0, 0)),
                # polar (x) tile: data-dependent k-block from the prefetched table
                # (clamped duplicates on padded steps -> DMA skipped).
                pl.BlockSpec((bcp, tk), lambda i, j, tbl, cnt: (0, tbl[i, j])),
                # ref*keep tile: constant across the reduction axis.
                pl.BlockSpec((bcp, tn), lambda i, j, tbl, cnt: (0, i)),
            ],
            out_specs=pl.BlockSpec((bcp, tn), lambda i, j, tbl, cnt: (0, i)),
            scratch_shapes=[pltpu.VMEM((bcp, tn), jnp.float32)],
        ),
        compiler_params=pltpu.CompilerParams(
            dimension_semantics=("parallel", "arbitrary"),
            vmem_limit_bytes=vmem_limit_bytes(bcp, tk, tn)),
    )(table, counts, M_blocks_bf16, x, r)

    return out[:BC, :Hc * Wc].reshape(B, C, Hc, Wc)


# ----------------------------------------------------------------------------
# Pure-numpy reference (mirrors F.grid_sample + advanced-index scatter)
# ----------------------------------------------------------------------------
def reference_forward(polar, ref, grid, xy):
    B, C, Hp, Wp = polar.shape
    out = ref.copy()
    px = (grid[:, 0] + 1.0) / 2.0 * (Wp - 1)
    py = (grid[:, 1] + 1.0) / 2.0 * (Hp - 1)
    x0 = np.floor(px).astype(np.int64); x1 = x0 + 1
    y0 = np.floor(py).astype(np.int64); y1 = y0 + 1
    wx1 = px - x0; wx0 = 1.0 - wx1
    wy1 = py - y0; wy0 = 1.0 - wy1

    def gather(b, yi, xi):
        valid = (yi >= 0) & (yi < Hp) & (xi >= 0) & (xi < Wp)
        yc = np.clip(yi, 0, Hp - 1); xc = np.clip(xi, 0, Wp - 1)
        return polar[b][:, yc, xc] * valid[None, :]

    for b in range(B):
        s = (gather(b, y0, x0) * (wy0 * wx0) + gather(b, y0, x1) * (wy0 * wx1)
             + gather(b, y1, x0) * (wy1 * wx0) + gather(b, y1, x1) * (wy1 * wx1))
        out[b][:, xy[:, 0], xy[:, 1]] = s                      # (C, N) scatter
    return out


if __name__ == "__main__":
    cart_size = (16, 16)     # ref_feat spatial size
    polar_size = (8, 16)     # polar_feat spatial size
    B, C = 2, 4

    M_np, keep_np, grid_np, xy_np = build_polar2cart_params(polar_size, cart_size)

    tn, tk, bcp = choose_tiles(cart_size[0] * cart_size[1],
                               polar_size[0] * polar_size[1], B * C)
    blocks_np, table_np, counts_np = build_block_plan(M_np, tk, tn)

    # bf16 weights / activations with f32 MXU accumulation.
    # TODO(synk): keep M in f32 (or bf16x2 split) if closer-than-1% parity with
    # torch's f32 grid_sample is required; doubles the M HBM stream.
    M_blocks = jnp.asarray(blocks_np, dtype=jnp.bfloat16)
    keep = jnp.asarray(keep_np, dtype=jnp.float32)
    table = jnp.asarray(table_np, dtype=jnp.int32)
    counts = jnp.asarray(counts_np, dtype=jnp.int32)

    key = jax.random.PRNGKey(0)
    k1, k2 = jax.random.split(key)
    polar_feat = jax.random.normal(k1, (B, C) + polar_size, dtype=jnp.float32)
    ref_feat = jax.random.normal(k2, (B, C) + cart_size, dtype=jnp.float32)

    out = polar2cart_forward(polar_feat, ref_feat, M_blocks, keep, table, counts,
                             tk=tk, tn=tn, bcp=bcp)
    out = jax.block_until_ready(out)

    want = reference_forward(np.asarray(polar_feat), np.asarray(ref_feat),
                             grid_np.astype(np.float64), xy_np)
    # bf16 inputs (weights + activations) with f32 accumulation: ~0.4% relative.
    np.testing.assert_allclose(np.asarray(out), want, rtol=2e-2, atol=2e-2)
    print("KERNEL_OK")
</pallas_src>

<mosaic_0001>
module attributes {stable_mosaic.version = 11 : i64} {
  func.func @_polar2cart_kernel(%arg0: i32, %arg1: i32, %arg2: memref<1x1xi32, #tpu.memory_space<smem>>, %arg3: memref<1xi32, #tpu.memory_space<smem>>, %arg4: memref<1x128x256xbf16, #tpu.memory_space<vmem>>, %arg5: memref<16x128xbf16, #tpu.memory_space<vmem>>, %arg6: memref<16x256xf32, #tpu.memory_space<vmem>>, %arg7: memref<16x256xf32, #tpu.memory_space<vmem>>, %arg8: memref<16x256xf32, #tpu.memory_space<vmem>>) attributes {dimension_semantics = [#tpu.dimension_semantics<parallel>, #tpu.dimension_semantics<arbitrary>], iteration_bounds = array<i64: 1, 1>, scalar_prefetch = 2 : i64, scratch_operands = 1 : i64, tpu.core_type = #tpu.core_type<tc>, window_params = [{transform_indices = @transform_0, window_bounds = array<i64: 1, 128, 256>}, {transform_indices = @transform_1, window_bounds = array<i64: 16, 128>}, {transform_indices = @transform_2, window_bounds = array<i64: 16, 256>}, {transform_indices = @transform_3, window_bounds = array<i64: 16, 256>}]} {
    %c0_i32 = arith.constant 0 : i32
    %0 = arith.cmpi eq, %arg1, %c0_i32 : i32
    %1 = arith.extui %0 : i1 to i32
    %c0_i32_0 = arith.constant 0 : i32
    %2 = arith.cmpi ne, %1, %c0_i32_0 : i32
    scf.if %2 {
      %cst = arith.constant 0.000000e+00 : f32
      %11 = vector.broadcast %cst : f32 to vector<16x256xf32>
      %c0 = arith.constant 0 : index
      %c0_4 = arith.constant 0 : index
      %12 = vector.load %arg8[%c0, %c0_4] : memref<16x256xf32, #tpu.memory_space<vmem>>, vector<16x256xf32>
      tpu.vector_store %arg8[%c0, %c0_4], %11 {strides = array<i32>} : memref<16x256xf32, #tpu.memory_space<vmem>>, vector<16x256xf32>,
    } else {
    }
    %3 = arith.index_cast %arg0 : i32 to index
    %4 = memref.load %arg3[%3] : memref<1xi32, #tpu.memory_space<smem>>
    %5 = arith.cmpi slt, %arg1, %4 : i32
    %6 = arith.extui %5 : i1 to i32
    %c0_i32_1 = arith.constant 0 : i32
    %7 = arith.cmpi ne, %6, %c0_i32_1 : i32
    scf.if %7 {
      %c0 = arith.constant 0 : index
      %c0_4 = arith.constant 0 : index
      %11 = vector.load %arg8[%c0, %c0_4] : memref<16x256xf32, #tpu.memory_space<vmem>>, vector<16x256xf32>
      %c0_5 = arith.constant 0 : index
      %c0_6 = arith.constant 0 : index
      %12 = vector.load %arg5[%c0_5, %c0_6] : memref<16x128xbf16, #tpu.memory_space<vmem>>, vector<16x128xbf16>
      %c0_7 = arith.constant 0 : index
      %c0_8 = arith.constant 0 : index
      %c0_9 = arith.constant 0 : index
      %13 = vector.load %arg4[%c0_7, %c0_8, %c0_9] : memref<1x128x256xbf16, #tpu.memory_space<vmem>>, vector<1x128x256xbf16>
      %14 = vector.shape_cast %13 : vector<1x128x256xbf16> to vector<128x256xbf16>
      %cst = arith.constant dense<0.000000e+00> : vector<16x256xf32>
      %15 = tpu.matmul %12, %14, %cst {dimension_numbers = #tpu.dot_dimension_numbers<[1], [0], [0], [1], [0, 0, 1, 1], [], []>} : vector<16x128xbf16>, vector<128x256xbf16>, vector<16x256xf32> -> vector<16x256xf32>
      %16 = arith.addf %11, %15 : vector<16x256xf32>
      %c0_10 = arith.constant 0 : index
      %c0_11 = arith.constant 0 : index
      %17 = vector.load %arg8[%c0_10, %c0_11] : memref<16x256xf32, #tpu.memory_space<vmem>>, vector<16x256xf32>
      tpu.vector_store %arg8[%c0_10, %c0_11], %16 {strides = array<i32>} : memref<16x256xf32, #tpu.memory_space<vmem>>, vector<16x256xf32>,
    } else {
    }
    %c0_i32_2 = arith.constant 0 : i32
    %8 = arith.cmpi eq, %arg1, %c0_i32_2 : i32
    %9 = arith.extui %8 : i1 to i32
    %c0_i32_3 = arith.constant 0 : i32
    %10 = arith.cmpi ne, %9, %c0_i32_3 : i32
    scf.if %10 {
      %c0 = arith.constant 0 : index
      %c0_4 = arith.constant 0 : index
      %11 = vector.load %arg6[%c0, %c0_4] : memref<16x256xf32, #tpu.memory_space<vmem>>, vector<16x256xf32>
      %c0_5 = arith.constant 0 : index
      %c0_6 = arith.constant 0 : index
      %12 = vector.load %arg8[%c0_5, %c0_6] : memref<16x256xf32, #tpu.memory_space<vmem>>, vector<16x256xf32>
      %13 = arith.addf %11, %12 : vector<16x256xf32>
      %c0_7 = arith.constant 0 : index
      %c0_8 = arith.constant 0 : index
      %14 = vector.load %arg7[%c0_7, %c0_8] : memref<16x256xf32, #tpu.memory_space<vmem>>, vector<16x256xf32>
      tpu.vector_store %arg7[%c0_7, %c0_8], %13 {strides = array<i32>} : memref<16x256xf32, #tpu.memory_space<vmem>>, vector<16x256xf32>,
    } else {
    }
    return
  }
  func.func @transform_0(%arg0: i32, %arg1: i32, %arg2: memref<1x1xi32, #tpu.memory_space<smem>>, %arg3: memref<1xi32, #tpu.memory_space<smem>>) -> (i32, i32, i32) {
    %c1_i32 = arith.constant 1 : i32
    %0 = arith.muli %arg0, %c1_i32 : i32
    %1 = arith.addi %0, %arg1 : i32
    %c0_i32 = arith.constant 0 : i32
    %c0_i32_0 = arith.constant 0 : i32
    %c0_i32_1 = arith.constant 0 : i32
    return %1, %c0_i32, %c0_i32_0 : i32, i32, i32
  }
  func.func @transform_1(%arg0: i32, %arg1: i32, %arg2: memref<1x1xi32, #tpu.memory_space<smem>>, %arg3: memref<1xi32, #tpu.memory_space<smem>>) -> (i32, i32) {
    %0 = arith.index_cast %arg0 : i32 to index
    %1 = arith.index_cast %arg1 : i32 to index
    %2 = memref.load %arg2[%0, %1] : memref<1x1xi32, #tpu.memory_space<smem>>
    %c0_i32 = arith.constant 0 : i32
    %c0_i32_0 = arith.constant 0 : i32
    return %c0_i32, %2 : i32, i32
  }
  func.func @transform_2(%arg0: i32, %arg1: i32, %arg2: memref<1x1xi32, #tpu.memory_space<smem>>, %arg3: memref<1xi32, #tpu.memory_space<smem>>) -> (i32, i32) {
    %c0_i32 = arith.constant 0 : i32
    %c0_i32_0 = arith.constant 0 : i32
    return %c0_i32, %arg0 : i32, i32
  }
  func.func @transform_3(%arg0: i32, %arg1: i32, %arg2: memref<1x1xi32, #tpu.memory_space<smem>>, %arg3: memref<1xi32, #tpu.memory_space<smem>>) -> (i32, i32) {
    %c0_i32 = arith.constant 0 : i32
    %c0_i32_0 = arith.constant 0 : i32
    return %c0_i32, %arg0 : i32, i32
  }
}

</mosaic_0001>

<llo_original>
// kernel: polar2cart_forward.1
$region0: #{polar2cart_forward.1}
  #allocation0 [shape = 'u32[]', space=smem, size = 0x4, offset = 0x4, fixed_abs, tag = 'smem constant byte address 0x4 - core index']
  #allocation1 [shape = 'u32[144,128]{1,0:T(1,128)}', space=vmem, size = 0x12000, scoped, tag = 'internal scratch']
  #allocation2 [shape = 'f32[16,256]{1,0:T(8,128)}', space=vmem, size = 0x4000, scoped, tag = 'scratch operand']
  #allocation3 [shape = 's32[1]{0}', space=sflag, size = 0x4, scoped, tag = 'scoped memory for polar2cart_forward.1']
  #allocation4 [shape = 's32[1,1]{1,0:T(1,128)S(6)}', space=smem, size = 0x200, scoped, tag = 'prefetched SMEM operand 0']
  #allocation5 [shape = 's32[1]{0:T(128)S(6)}', space=smem, size = 0x200, scoped, tag = 'prefetched SMEM operand 1']
  %s0 = inlined_call_operand.<no memory space> [shape: s32[1,1], index: 0, kind: input, shape index: {}]
  %s1 = inlined_call_operand.<no memory space> [shape: s32[1], index: 1, kind: input, shape index: {}]
  %s2 = inlined_call_operand.vmem [shape: bf16[1,128,256], index: 2, kind: input, shape index: {}]
  %s3 = inlined_call_operand.vmem [shape: bf16[16,128], index: 3, kind: input, shape index: {}]
  %s4 = inlined_call_operand.vmem [shape: f32[16,256], index: 4, kind: input, shape index: {}]
  %s5 = inlined_call_operand.vmem [shape: f32[16,256], index: 5, kind: output, shape index: {}]
  %s6 = sld [smem:[#allocation0]]
  $region34: #{polar2cart_forward.1} parent=0
    _
  %s8 = ssub.s32 1, %s6
  %s9 = scalar_select 0, %s8, %s6
  %10 = sst [smem:[#allocation4]] %s0
  %11 = sst [smem:[#allocation5]] %s1
  // Predicated region
  $region2: #{polar2cart_forward.1} parent=0 // pred_check
    _
  $region3: #{polar2cart_forward.1} parent=0 // pred_check_branch
    %13 = sbr.rel (0) target = $region5
  $region4: #{polar2cart_forward.1} parent=0 // pred_region
    %s14 = sadd.s32 0, 0
    %p15 = scmp.lt.s32.totalorder %s14, 0
    %s16 = scalar_select %p15, %s14, 0
    %s17 = smul.addr %s16, 32
    %s18 = smul.addr %s17, 4
    %s19 = scalar_lea.vmem %s2, %s18
    %s20 = sadd.s32 0, 0
  $region5: #{polar2cart_forward.1} parent=0 // pred_fallthru
    _
  // Predicated region
  $region6: #{polar2cart_forward.1} parent=0 // pred_check
    _
  $region7: #{polar2cart_forward.1} parent=0 // pred_check_branch
    %22 = sbr.rel (0) target = $region9
  $region8: #{polar2cart_forward.1} parent=0 // pred_region
    %s23 = sadd.s32 0, 0
    %s24 = smul.u32 %s23, 128
    %s25 = sadd.s32 %s24, 0
    %s26 = sld [smem:[#allocation4 + %s25]]
    %p27 = scmp.lt.s32.totalorder %s26, 0
    %s28 = scalar_select %p27, %s26, 0
    %s29 = smul.addr %s28, 4
    %s30 = scalar_lea.vmem %s3, %s29
    %s31 = sadd.s32 0, 0
    %s32 = smul.u32 %s31, 128
    %s33 = sadd.s32 %s32, 0
    %s34 = sld [smem:[#allocation4 + %s33]]
  $region9: #{polar2cart_forward.1} parent=0 // pred_fallthru
    _
  // Predicated region
  $region10: #{polar2cart_forward.1} parent=0 // pred_check
    _
  $region11: #{polar2cart_forward.1} parent=0 // pred_check_branch
    %36 = sbr.rel (0) target = $region13
  $region12: #{polar2cart_forward.1} parent=0 // pred_region
    _
  $region13: #{polar2cart_forward.1} parent=0 // pred_fallthru
    _
  %s37 = sadd.s32 0, 0
  %p38 = scmp.lt.s32.totalorder %s37, 0
  %s39 = scalar_select %p38, %s37, 0
  %s40 = smul.addr %s39, 32
  %s41 = smul.addr %s40, 4
  %s42 = scalar_lea.vmem %s2, %s41
  %s43 = sadd.s32 0, 0
  %s44 = smul.u32 %s43, 128
  %s45 = sadd.s32 %s44, 0
  %s46 = sld [smem:[#allocation4 + %s45]]
  %p47 = scmp.lt.s32.totalorder %s46, 0
  %s48 = scalar_select %p47, %s46, 0
  %s49 = smul.addr %s48, 4
  %s50 = scalar_lea.vmem %s3, %s49
  %s51 = sadd.s32 0, 0
  %p52 = scmp.lt.s32.totalorder %s51, 0
  %s53 = scalar_select %p52, %s51, 0
  %s54 = smul.addr %s53, 32
  %s55 = smul.addr %s54, 4
  %s56 = scalar_lea.vmem %s2, %s55
  %s57 = sadd.s32 0, 0
  %s58 = sadd.s32 0, 0
  %s59 = smul.u32 %s58, 128
  %s60 = sadd.s32 %s59, 0
  %s61 = sld [smem:[#allocation4 + %s60]]
  %p62 = scmp.lt.s32.totalorder %s61, 0
  %s63 = scalar_select %p62, %s61, 0
  %s64 = smul.addr %s63, 4
  %s65 = scalar_lea.vmem %s3, %s64
  %s66 = sadd.s32 0, 0
  %s67 = smul.u32 %s66, 128
  %s68 = sadd.s32 %s67, 0
  %s69 = sld [smem:[#allocation4 + %s68]]
  %p71 = scmp.eq.s32.totalorder 0, 0
  // Predicated region
  $region14: #{polar2cart_forward.1} parent=0 // pred_check
    %p72 = pneg %p71
  $region15: #{polar2cart_forward.1} parent=0 // pred_check_branch
    %74 = sbr.rel (%p72) target = $region17
  $region16: #{polar2cart_forward.1} parent=0 // pred_region
    %75 = vst [vmem:[#allocation2] sm:$0xff] 0.0
    %76 = vst [vmem:[#allocation2 + $0x8] sm:$0xff] 0.0
    %77 = vst [vmem:[#allocation2 + $0x10] sm:$0xff] 0.0
    %78 = vst [vmem:[#allocation2 + $0x18] sm:$0xff] 0.0
  $region17: #{polar2cart_forward.1} parent=0 // pred_fallthru
    _
  %s79 = sld [smem:[#allocation5]]
  %p80 = scmp.lt.s32.totalorder 0, %s79
  // Predicated region
  $region18: #{polar2cart_forward.1} parent=0 // pred_check
    %p81 = pneg %p80
  $region19: #{polar2cart_forward.1} parent=0 // pred_check_branch
    %83 = sbr.rel (%p81) target = $region21
  $region20: #{polar2cart_forward.1} parent=0 // pred_region
    %v84 = vld [vmem:[#allocation2] sm:$0xff]
    %v85 = vld [vmem:[#allocation2 + $0x8] sm:$0xff]
    %v86 = vld [vmem:[#allocation2 + $0x10] sm:$0xff]
    %v87 = vld [vmem:[#allocation2 + $0x18] sm:$0xff]
    %v88 = vld [vmem:[%s65] sm:$0xf]
    %v89 = vld [vmem:[%s65 + $0x4] sm:$0xf]
    %v90 = vld [vmem:[%s56] sm:$0xff]
    %v91 = vld [vmem:[%s56 + $0x8] sm:$0xff]
    %v92 = vld [vmem:[%s56 + $0x10] sm:$0xff]
    %v93 = vld [vmem:[%s56 + $0x18] sm:$0xff]
    %v94 = vld [vmem:[%s56 + $0x20] sm:$0xff]
    %v95 = vld [vmem:[%s56 + $0x28] sm:$0xff]
    %v96 = vld [vmem:[%s56 + $0x30] sm:$0xff]
    %v97 = vld [vmem:[%s56 + $0x38] sm:$0xff]
    %v98 = vld [vmem:[%s56 + $0x40] sm:$0xff]
    %v99 = vld [vmem:[%s56 + $0x48] sm:$0xff]
    %v100 = vld [vmem:[%s56 + $0x50] sm:$0xff]
    %v101 = vld [vmem:[%s56 + $0x58] sm:$0xff]
    %v102 = vld [vmem:[%s56 + $0x60] sm:$0xff]
    %v103 = vld [vmem:[%s56 + $0x68] sm:$0xff]
    %v104 = vld [vmem:[%s56 + $0x70] sm:$0xff]
    %v105 = vld [vmem:[%s56 + $0x78] sm:$0xff]
    %v108 = vunpack.c.l.b16 %v88
    %v109 = vunpack.c.l.b16 %v89
    %v110 = vpack.c.b16 %v109, %v108
    %v128 = vunpack.c.l.b16 %v90
    %v129 = vunpack.c.h.b16 %v90
    %v130 = vunpack.c.l.b16 %v91
    %v131 = vunpack.c.h.b16 %v91
    %v132 = vunpack.c.l.b16 %v92
    %v133 = vunpack.c.h.b16 %v92
    %v134 = vunpack.c.l.b16 %v93
    %v135 = vunpack.c.h.b16 %v93
    %v136 = vunpack.c.l.b16 %v94
    %v137 = vunpack.c.h.b16 %v94
    %v138 = vunpack.c.l.b16 %v95
    %v139 = vunpack.c.h.b16 %v95
    %v140 = vunpack.c.l.b16 %v96
    %v141 = vunpack.c.h.b16 %v96
    %v142 = vunpack.c.l.b16 %v97
    %v143 = vunpack.c.h.b16 %v97
    %v144 = vunpack.c.l.b16 %v98
    %v145 = vunpack.c.h.b16 %v98
    %v146 = vunpack.c.l.b16 %v99
    %v147 = vunpack.c.h.b16 %v99
    %v148 = vunpack.c.l.b16 %v100
    %v149 = vunpack.c.h.b16 %v100
    %v150 = vunpack.c.l.b16 %v101
    %v151 = vunpack.c.h.b16 %v101
    %v152 = vunpack.c.l.b16 %v102
    %v153 = vunpack.c.h.b16 %v102
    %v154 = vunpack.c.l.b16 %v103
    %v155 = vunpack.c.h.b16 %v103
    %v156 = vunpack.c.l.b16 %v104
    %v157 = vunpack.c.h.b16 %v104
    %v158 = vunpack.c.l.b16 %v105
    %v159 = vunpack.c.h.b16 %v105
    %v160 = vpack.c.b16 %v130, %v128
    %v161 = vpack.c.b16 %v131, %v129
    %v162 = vpack.c.b16 %v134, %v132
    %v163 = vpack.c.b16 %v135, %v133
    %v164 = vpack.c.b16 %v138, %v136
    %v165 = vpack.c.b16 %v139, %v137
    %v166 = vpack.c.b16 %v142, %v140
    %v167 = vpack.c.b16 %v143, %v141
    %v168 = vpack.c.b16 %v146, %v144
    %v169 = vpack.c.b16 %v147, %v145
    %v170 = vpack.c.b16 %v150, %v148
    %v171 = vpack.c.b16 %v151, %v149
    %v172 = vpack.c.b16 %v154, %v152
    %v173 = vpack.c.b16 %v155, %v153
    %v174 = vpack.c.b16 %v158, %v156
    %v175 = vpack.c.b16 %v159, %v157
    %192 = vmatprep.subr.bf16.mxu0 %v161
    %193 = vmatpush1.bf16.msra.mxu0 %v160
    %194 = vmatprep.subr.bf16.mxu0 %v163
    %195 = vmatpush1.bf16.msra.mxu0 %v162
    %196 = vmatprep.subr.bf16.mxu0 %v165
    %197 = vmatpush1.bf16.msra.mxu0 %v164
    %198 = vmatprep.subr.bf16.mxu0 %v167
    %199 = vmatpush1.bf16.msra.mxu0 %v166
    %200 = vmatprep.subr.bf16.mxu0 %v169
    %201 = vmatpush1.bf16.msra.mxu0 %v168
    %202 = vmatprep.subr.bf16.mxu0 %v171
    %203 = vmatpush1.bf16.msra.mxu0 %v170
    %204 = vmatprep.subr.bf16.mxu0 %v173
    %205 = vmatpush1.bf16.msra.mxu0 %v172
    %206 = vmatprep.subr.bf16.mxu0 %v175
    %207 = vmatpush1.bf16.msra.mxu0 %v174
    %208 = vmatprep.subr.bf16.mxu0 0
    %209 = vmatpush1.bf16.msra.mxu0 0
    %210 = vmatprep.subr.bf16.mxu0 0
    %211 = vmatpush1.bf16.msra.mxu0 0
    %212 = vmatprep.subr.bf16.mxu0 0
    %213 = vmatpush1.bf16.msra.mxu0 0
    %214 = vmatprep.subr.bf16.mxu0 0
    %215 = vmatpush1.bf16.msra.mxu0 0
    %216 = vmatprep.subr.bf16.mxu0 0
    %217 = vmatpush1.bf16.msra.mxu0 0
    %218 = vmatprep.subr.bf16.mxu0 0
    %219 = vmatpush1.bf16.msra.mxu0 0
    %220 = vmatprep.subr.bf16.mxu0 0
    %221 = vmatpush1.bf16.msra.mxu0 0
    %222 = vmatprep.subr.bf16.mxu0 0
    %223 = vmatpush1.bf16.msra.mxu0 0
    %224 = vmatprep.mubr.bf16.mxu0 0
    %225 = vmatmul.mubr.bf16.gmra.mrb[0].mxu0 %v110
    %v226 = vpop.f32.mrb[0].mxu0
    %v227 = vadd.f32 0.0, %v226
    %v228 = vpop.f32.mrb[0].mxu0
    %v229 = vadd.f32 0.0, %v228
    %v230 = vpop.f32.mrb[0].mxu0
    %v231 = vadd.f32 0.0, %v230
    %v232 = vpop.f32.mrb[0].mxu0
    %v233 = vadd.f32 0.0, %v232
    %234 = vdwg.mxu0
    %v235 = vadd.f32 %v84, %v227
    %v236 = vadd.f32 %v85, %v229
    %v237 = vadd.f32 %v86, %v231
    %v238 = vadd.f32 %v87, %v233
    %239 = vst [vmem:[#allocation2] sm:$0xff] %v235
    %240 = vst [vmem:[#allocation2 + $0x8] sm:$0xff] %v236
    %241 = vst [vmem:[#allocation2 + $0x10] sm:$0xff] %v237
    %242 = vst [vmem:[#allocation2 + $0x18] sm:$0xff] %v238
  $region21: #{polar2cart_forward.1} parent=0 // pred_fallthru
    _
  // Predicated region
  $region22: #{polar2cart_forward.1} parent=0 // pred_check
    %p243 = pneg %p71
  $region23: #{polar2cart_forward.1} parent=0 // pred_check_branch
    %245 = sbr.rel (%p243) target = $region25
  $region24: #{polar2cart_forward.1} parent=0 // pred_region
    %v246 = vld [vmem:[%s4] sm:$0xff]
    %v247 = vld [vmem:[%s4 + $0x8] sm:$0xff]
    %v248 = vld [vmem:[%s4 + $0x10] sm:$0xff]
    %v249 = vld [vmem:[%s4 + $0x18] sm:$0xff]
    %v250 = vld [vmem:[#allocation2] sm:$0xff]
    %v251 = vld [vmem:[#allocation2 + $0x8] sm:$0xff]
    %v252 = vld [vmem:[#allocation2 + $0x10] sm:$0xff]
    %v253 = vld [vmem:[#allocation2 + $0x18] sm:$0xff]
    %v254 = vadd.f32 %v246, %v250
    %v255 = vadd.f32 %v247, %v251
    %v256 = vadd.f32 %v248, %v252
    %v257 = vadd.f32 %v249, %v253
    %258 = vst [vmem:[%s5] sm:$0xff] %v254
    %259 = vst [vmem:[%s5 + $0x8] sm:$0xff] %v255
    %260 = vst [vmem:[%s5 + $0x10] sm:$0xff] %v256
    %261 = vst [vmem:[%s5 + $0x18] sm:$0xff] %v257
  $region25: #{polar2cart_forward.1} parent=0 // pred_fallthru
    _
  // Predicated region
  $region26: #{polar2cart_forward.1} parent=0 // pred_check
    _
  $region27: #{polar2cart_forward.1} parent=0 // pred_check_branch
    %263 = sbr.rel (0) target = $region29
  $region28: #{polar2cart_forward.1} parent=0 // pred_region
    _
  $region29: #{polar2cart_forward.1} parent=0 // pred_fallthru
    _
  // Predicated region
  $region30: #{polar2cart_forward.1} parent=0 // pred_check
    _
  $region31: #{polar2cart_forward.1} parent=0 // pred_check_branch
    %265 = sbr.rel (0) target = $region33
  $region32: #{polar2cart_forward.1} parent=0 // pred_region
    _
  $region33: #{polar2cart_forward.1} parent=0 // pred_fallthru
    _

</llo_original>
